<compile_context>
chip_gen: v7x
topology: tpu7x:2x2x1
jax: 0.10.0
libtpu: 0.0.40
codegen_flags: <defaults>
</compile_context>

<pallas_src>
import functools

import jax
import jax.numpy as jnp
from jax.experimental import pallas as pl
from jax.experimental.pallas import tpu as pltpu


def _round_up(n, m):
    return ((n + m - 1) // m) * m


def _pick_time_block(t, max_tt=16):
    """Largest divisor of t that is <= max_tt (timesteps per grid step)."""
    tt = min(t, max_tt)
    while t % tt != 0:
        tt -= 1
    return tt


# ----------------------------------------------------------------------------
# Dense (Linear) kernel: y = x @ w + b, tiled over rows.  Used for the
# embedding / output projections which are lifted out of the recurrence so
# they run over all T*B rows at once (near-full MXU occupancy).
# ----------------------------------------------------------------------------
def _dense_kernel(x_ref, w_ref, b_ref, o_ref):
    o_ref[...] = (jnp.dot(x_ref[...], w_ref[...],
                          preferred_element_type=jnp.float32)
                  + b_ref[...]).astype(o_ref.dtype)


def _dense(x, w, b, *, block_rows=512):
    m, k = x.shape
    n = w.shape[1]
    bm = min(block_rows, m)
    return pl.pallas_call(
        _dense_kernel,
        out_shape=jax.ShapeDtypeStruct((m, n), jnp.float32),
        grid=(pl.cdiv(m, bm),),
        in_specs=[
            pl.BlockSpec((bm, k), lambda i: (i, 0)),
            pl.BlockSpec((k, n), lambda i: (0, 0)),
            pl.BlockSpec((1, n), lambda i: (0, 0)),
        ],
        out_specs=pl.BlockSpec((bm, n), lambda i: (i, 0)),
        compiler_params=pltpu.CompilerParams(
            dimension_semantics=("parallel",)),
    )(x, w, b)


# ----------------------------------------------------------------------------
# Recurrent kernel: stacked LSTMCells over a block of TT timesteps per grid
# step.  Weights are resident in VMEM; h/c are resident output blocks.
# ----------------------------------------------------------------------------
def _lstm_recurrence_kernel(n_layers, hp, tt_block,
                            emb_ref, wih_ref, whh_ref, bg_ref,
                            h0_ref, c0_ref,
                            hseq_ref, h_ref, c_ref):
    """One grid step == tt_block timesteps of the module's recurrence.

    emb_ref  : (TT, Bp, Hp)      embedded inputs for this time block (f32)
    wih_ref  : (L, Hp, 4*Hp)     per-layer W_ih^T, padded, bf16 (resident)
    whh_ref  : (L, Hp, 4*Hp)     per-layer W_hh^T, padded, bf16 (resident)
    bg_ref   : (L, 1, 4*Hp)      per-layer (b_ih + b_hh), padded, f32
    h0_ref   : (L, Bp, Hp)       initial hidden states (f32)
    c0_ref   : (L, Bp, Hp)       initial cell states (f32)
    hseq_ref : (TT, Bp, Hp)      per-timestep top-layer hidden output
    h_ref    : (L, Bp, Hp)       resident hidden carry (accumulator block)
    c_ref    : (L, Bp, Hp)       resident cell carry  (accumulator block)
    """
    @pl.when(pl.program_id(0) == 0)
    def _():
        h_ref[...] = h0_ref[...]
        c_ref[...] = c0_ref[...]

    for tt in range(tt_block):                 # static unroll over the time block
        h_in = emb_ref[tt]                     # (Bp, Hp) f32 (already embedded)
        for layer in range(n_layers):          # static unroll over layers
            h_prev = h_ref[layer]
            c_prev = c_ref[layer]
            # Two accumulating MXU dots with resident bf16 weights (no concat).
            gates = (jnp.dot(h_in.astype(jnp.bfloat16), wih_ref[layer],
                             preferred_element_type=jnp.float32)
                     + jnp.dot(h_prev.astype(jnp.bfloat16), whh_ref[layer],
                               preferred_element_type=jnp.float32)
                     + bg_ref[layer])          # (Bp, 4Hp) f32
            # Lane-dense gate slices (Hp is a multiple of 128): sigmoid on
            # i/f/o, tanh on g — half the EUP work of a where(tanh, sigmoid).
            i_g = jax.nn.sigmoid(gates[:, 0 * hp:1 * hp])
            f_g = jax.nn.sigmoid(gates[:, 1 * hp:2 * hp])
            g_g = jnp.tanh(gates[:, 2 * hp:3 * hp])
            o_g = jax.nn.sigmoid(gates[:, 3 * hp:4 * hp])
            c_new = f_g * c_prev + i_g * g_g
            h_new = o_g * jnp.tanh(c_new)
            h_ref[layer] = h_new
            c_ref[layer] = c_new
            h_in = h_new
        hseq_ref[tt] = h_in                    # top-layer hidden for this step


def lstm_dis_forward_seq(x_seq, params, hidden):
    """Apply the module once per timestep.

    x_seq  : (T, B, input_size)
    params : (we, be, wih, whh, bg, wo, bo) in original (unpadded) sizes
    hidden : (h, c) each (L, B, H)
    Returns (y_seq (T, B, output_size), (h_new, c_new) each (L, B, H)).
    """
    we, be, wih, whh, bg, wo, bo = params
    h0, c0 = hidden
    T, B, input_size = x_seq.shape
    L, _, H = h0.shape
    output_size = wo.shape[1]

    # Padded (lane/sublane dense) sizes and time block.
    Bp = _round_up(B, 8)
    Ip = _round_up(input_size, 128)
    Hp = _round_up(H, 128)
    Op = _round_up(output_size, 128)
    TT = _pick_time_block(T)

    f32 = jnp.float32
    bf16 = jnp.bfloat16

    # --- Pad activations / states (zeros in padded rows/lanes). ---
    x_p = jnp.zeros((T, Bp, Ip), f32).at[:, :B, :input_size].set(x_seq.astype(f32))
    h0_p = jnp.zeros((L, Bp, Hp), f32).at[:, :B, :H].set(h0.astype(f32))
    c0_p = jnp.zeros((L, Bp, Hp), f32).at[:, :B, :H].set(c0.astype(f32))

    # --- Pad weights.  Per-gate column padding: gate g's columns land at
    #     [g*Hp, g*Hp + H) so the kernel's Hp-wide gate slices stay correct.
    #     Recurrent weights are bf16 (MXU operands only). ---
    we_p = jnp.zeros((Ip, Hp), f32).at[:input_size, :H].set(we.astype(f32))
    be_p = jnp.zeros((1, Hp), f32).at[:, :H].set(be.astype(f32))
    wih_p = jnp.zeros((L, Hp, 4 * Hp), bf16)
    whh_p = jnp.zeros((L, Hp, 4 * Hp), bf16)
    bg_p = jnp.zeros((L, 1, 4 * Hp), f32)
    for g in range(4):
        wih_p = wih_p.at[:, :H, g * Hp:g * Hp + H].set(
            wih[:, :, g * H:(g + 1) * H].astype(bf16))
        whh_p = whh_p.at[:, :H, g * Hp:g * Hp + H].set(
            whh[:, :, g * H:(g + 1) * H].astype(bf16))
        bg_p = bg_p.at[:, :, g * Hp:g * Hp + H].set(
            bg[:, :, g * H:(g + 1) * H].astype(f32))
    wo_p = jnp.zeros((Hp, Op), f32).at[:H, :output_size].set(wo.astype(f32))
    bo_p = jnp.zeros((1, Op), f32).at[:, :output_size].set(bo.astype(f32))

    # --- 1) Embedding projection over all T timesteps at once. ---
    emb = _dense(x_p.reshape(T * Bp, Ip), we_p, be_p).reshape(T, Bp, Hp)

    # --- 2) Stacked LSTMCell recurrence (the only serial part). ---
    kernel = functools.partial(_lstm_recurrence_kernel, L, Hp, TT)

    block_bytes = (
        2 * TT * Bp * Hp * 4            # emb block + hseq block
        + 2 * L * Hp * 4 * Hp * 2       # wih + whh (bf16, resident)
        + L * 4 * Hp * 4                # fused biases
        + 4 * L * Bp * Hp * 4)          # h0, c0, h carry, c carry
    vmem_limit = int(min(max(4 * block_bytes + (8 << 20), 32 << 20), 48 << 20))

    flops = 2 * T * L * 2 * Bp * Hp * (4 * Hp)        # two dots per layer/step
    transcendentals = T * L * 5 * Bp * Hp             # 3 sigmoid + 2 tanh
    bytes_accessed = (T * Bp * Hp * 4 * 2             # emb in + hseq out
                      + (wih_p.size + whh_p.size) * 2
                      + bg_p.size * 4
                      + 2 * (h0_p.size + c0_p.size) * 4)

    hseq_p, h_p, c_p = pl.pallas_call(
        kernel,
        out_shape=(
            jax.ShapeDtypeStruct((T, Bp, Hp), f32),
            jax.ShapeDtypeStruct((L, Bp, Hp), f32),
            jax.ShapeDtypeStruct((L, Bp, Hp), f32),
        ),
        grid=(T // TT,),
        in_specs=[
            # Per-time-block embedded input: only this block changes per step.
            pl.BlockSpec((TT, Bp, Hp), lambda t: (t, 0, 0)),
            # Weights / biases / initial state: constant index maps -> DMA'd
            # once, resident in VMEM for the whole sequence.
            pl.BlockSpec((L, Hp, 4 * Hp), lambda t: (0, 0, 0)),
            pl.BlockSpec((L, Hp, 4 * Hp), lambda t: (0, 0, 0)),
            pl.BlockSpec((L, 1, 4 * Hp), lambda t: (0, 0, 0)),
            pl.BlockSpec((L, Bp, Hp), lambda t: (0, 0, 0)),
            pl.BlockSpec((L, Bp, Hp), lambda t: (0, 0, 0)),
        ],
        out_specs=(
            # Per-time-block top-layer hidden output.
            pl.BlockSpec((TT, Bp, Hp), lambda t: (t, 0, 0)),
            # Resident carries: written back to HBM once at end of grid.
            pl.BlockSpec((L, Bp, Hp), lambda t: (0, 0, 0)),
            pl.BlockSpec((L, Bp, Hp), lambda t: (0, 0, 0)),
        ),
        compiler_params=pltpu.CompilerParams(
            dimension_semantics=("arbitrary",),
            vmem_limit_bytes=vmem_limit),
        cost_estimate=pl.CostEstimate(flops=int(flops),
                                      transcendentals=int(transcendentals),
                                      bytes_accessed=int(bytes_accessed)),
    )(emb, wih_p, whh_p, bg_p, h0_p, c0_p)

    # --- 3) Output projection over all T timesteps at once. ---
    y_p = _dense(hseq_p.reshape(T * Bp, Hp), wo_p, bo_p).reshape(T, Bp, Op)

    # Slice the padding back off.
    y = y_p[:, :B, :output_size]
    h_new = h_p[:, :B, :H]
    c_new = c_p[:, :B, :H]
    return y, (h_new, c_new)


def lstm_dis_forward(x, params, hidden):
    """Single forward() call of the module (one timestep). x: (B, input_size)."""
    y_seq, hidden_new = lstm_dis_forward_seq(x[None], params, hidden)
    return y_seq[0], hidden_new


# ----------------------------------------------------------------------------
# Pure-JAX references mirroring the PyTorch module (for correctness checking).
# ----------------------------------------------------------------------------
def _reference_forward(x, params, hidden):
    we, be, wih, whh, bg, wo, bo = params
    h0, c0 = hidden
    H = h0.shape[-1]
    h_in = x @ we + be
    h_list, c_list = [], []
    for layer in range(h0.shape[0]):
        gates = h_in @ wih[layer] + h0[layer] @ whh[layer] + bg[layer]
        i_g = jax.nn.sigmoid(gates[:, 0 * H:1 * H])
        f_g = jax.nn.sigmoid(gates[:, 1 * H:2 * H])
        g_g = jnp.tanh(gates[:, 2 * H:3 * H])
        o_g = jax.nn.sigmoid(gates[:, 3 * H:4 * H])
        c_new = f_g * c0[layer] + i_g * g_g
        h_new = o_g * jnp.tanh(c_new)
        h_list.append(h_new)
        c_list.append(c_new)
        h_in = h_new
    y = h_in @ wo + bo
    return y, (jnp.stack(h_list), jnp.stack(c_list))


def _reference_forward_seq(x_seq, params, hidden):
    ys = []
    for t in range(x_seq.shape[0]):
        y, hidden = _reference_forward(x_seq[t], params, hidden)
        ys.append(y)
    return jnp.stack(ys), hidden


def init_params(key, input_size, output_size, hidden_size, n_layers):
    """Deterministic parameter init (uniform, PyTorch-like scale)."""
    ks = jax.random.split(key, 7)

    def unif(k, shape, fan_in):
        bound = 1.0 / jnp.sqrt(fan_in)
        return jax.random.uniform(k, shape, jnp.float32, -bound, bound)

    we = unif(ks[0], (input_size, hidden_size), input_size)          # embed W^T
    be = unif(ks[1], (1, hidden_size), input_size)                   # embed bias
    wih = unif(ks[2], (n_layers, hidden_size, 4 * hidden_size), hidden_size)
    whh = unif(ks[3], (n_layers, hidden_size, 4 * hidden_size), hidden_size)
    # b_ih + b_hh combined (they are only ever summed in the forward pass).
    bg = (unif(ks[4], (n_layers, 1, 4 * hidden_size), hidden_size)
          + unif(ks[5], (n_layers, 1, 4 * hidden_size), hidden_size))
    wo = unif(ks[6], (hidden_size, output_size), hidden_size)        # output W^T
    bo = unif(jax.random.fold_in(key, 99), (1, output_size), hidden_size)
    return we, be, wih, whh, bg, wo, bo


if __name__ == "__main__":
    input_size = 16
    output_size = 8
    hidden_size = 32
    n_layers = 2
    batch_size = 2
    seq_len = 8

    key = jax.random.PRNGKey(0)
    k_par, k_x = jax.random.split(key)

    params = init_params(k_par, input_size, output_size, hidden_size, n_layers)

    # init_hidden(): zeros for every layer.
    h0 = jnp.zeros((n_layers, batch_size, hidden_size), jnp.float32)
    c0 = jnp.zeros((n_layers, batch_size, hidden_size), jnp.float32)

    # A sequence of inputs; the module's forward() is applied once per timestep.
    x_seq = jax.random.normal(k_x, (seq_len, batch_size, input_size), jnp.float32)

    y_seq, (h_new, c_new) = lstm_dis_forward_seq(x_seq, params, (h0, c0))
    jax.block_until_ready((y_seq, h_new, c_new))

    # Tolerances account for bf16 MXU operands in the recurrence (reference
    # runs fully in f32).
    y_ref, (h_ref, c_ref) = _reference_forward_seq(x_seq, params, (h0, c0))
    assert jnp.allclose(y_seq, y_ref, atol=5e-2, rtol=5e-2)
    assert jnp.allclose(h_new, h_ref, atol=5e-2, rtol=5e-2)
    assert jnp.allclose(c_new, c_ref, atol=5e-2, rtol=5e-2)

    # Single-step call (exactly one module forward()).
    y1, (h1, c1) = lstm_dis_forward(x_seq[0], params, (h0, c0))
    jax.block_until_ready(y1)
    y1_ref, (h1_ref, c1_ref) = _reference_forward(x_seq[0], params, (h0, c0))
    assert jnp.allclose(y1, y1_ref, atol=5e-2, rtol=5e-2)
    assert jnp.allclose(h1, h1_ref, atol=5e-2, rtol=5e-2)
    assert jnp.allclose(c1, c1_ref, atol=5e-2, rtol=5e-2)

    print("KERNEL_OK")
</pallas_src>

<mosaic_0001>
module attributes {stable_mosaic.version = 11 : i64} {
  func.func @_dense_kernel(%arg0: i32, %arg1: memref<64x128xf32, #tpu.memory_space<vmem>>, %arg2: memref<128x128xf32, #tpu.memory_space<vmem>>, %arg3: memref<1x128xf32, #tpu.memory_space<vmem>>, %arg4: memref<64x128xf32, #tpu.memory_space<vmem>>) attributes {dimension_semantics = [#tpu.dimension_semantics<parallel>], iteration_bounds = array<i64: 1>, scalar_prefetch = 0 : i64, scratch_operands = 0 : i64, tpu.core_type = #tpu.core_type<tc>, window_params = [{transform_indices = @transform_0, window_bounds = array<i64: 64, 128>}, {pipeline_mode = #tpu.pipeline_mode<synchronous>, transform_indices = @transform_1, window_bounds = array<i64: 128, 128>}, {pipeline_mode = #tpu.pipeline_mode<synchronous>, transform_indices = @transform_2, window_bounds = array<i64: 1, 128>}, {transform_indices = @transform_3, window_bounds = array<i64: 64, 128>}]} {
    %c0 = arith.constant 0 : index
    %c0_0 = arith.constant 0 : index
    %0 = vector.load %arg1[%c0, %c0_0] : memref<64x128xf32, #tpu.memory_space<vmem>>, vector<64x128xf32>
    %c0_1 = arith.constant 0 : index
    %c0_2 = arith.constant 0 : index
    %1 = vector.load %arg2[%c0_1, %c0_2] : memref<128x128xf32, #tpu.memory_space<vmem>>, vector<128x128xf32>
    %cst = arith.constant dense<0.000000e+00> : vector<64x128xf32>
    %2 = tpu.matmul %0, %1, %cst {dimension_numbers = #tpu.dot_dimension_numbers<[1], [0], [0], [1], [0, 0, 1, 1], [], []>} : vector<64x128xf32>, vector<128x128xf32>, vector<64x128xf32> -> vector<64x128xf32>
    %c0_3 = arith.constant 0 : index
    %c0_4 = arith.constant 0 : index
    %3 = vector.load %arg3[%c0_3, %c0_4] : memref<1x128xf32, #tpu.memory_space<vmem>>, vector<1x128xf32>
    %4 = vector.broadcast %3 : vector<1x128xf32> to vector<64x128xf32>
    %5 = arith.addf %2, %4 : vector<64x128xf32>
    %c0_5 = arith.constant 0 : index
    %c0_6 = arith.constant 0 : index
    %6 = vector.load %arg4[%c0_5, %c0_6] : memref<64x128xf32, #tpu.memory_space<vmem>>, vector<64x128xf32>
    tpu.vector_store %arg4[%c0_5, %c0_6], %5 {strides = array<i32>} : memref<64x128xf32, #tpu.memory_space<vmem>>, vector<64x128xf32>,
    return
  }
  func.func @transform_0(%arg0: i32) -> (i32, i32) {
    %c0_i32 = arith.constant 0 : i32
    %c0_i32_0 = arith.constant 0 : i32
    return %arg0, %c0_i32 : i32, i32
  }
  func.func @transform_1(%arg0: i32) -> (i32, i32) {
    %c0_i32 = arith.constant 0 : i32
    %c0_i32_0 = arith.constant 0 : i32
    %c0_i32_1 = arith.constant 0 : i32
    return %c0_i32, %c0_i32_0 : i32, i32
  }
  func.func @transform_2(%arg0: i32) -> (i32, i32) {
    %c0_i32 = arith.constant 0 : i32
    %c0_i32_0 = arith.constant 0 : i32
    %c0_i32_1 = arith.constant 0 : i32
    return %c0_i32, %c0_i32_0 : i32, i32
  }
  func.func @transform_3(%arg0: i32) -> (i32, i32) {
    %c0_i32 = arith.constant 0 : i32
    %c0_i32_0 = arith.constant 0 : i32
    return %arg0, %c0_i32 : i32, i32
  }
}

</mosaic_0001>

<llo_original>
// kernel: tpu_custom_call.1
$region0: #{tpu_custom_call.1}
  #allocation0 [shape = 'u32[]', space=smem, size = 0x4, offset = 0x4, fixed_abs, tag = 'smem constant byte address 0x4 - core index']
  #allocation1 [shape = 'u32[144,128]{1,0:T(1,128)}', space=vmem, size = 0x12000, scoped, tag = 'internal scratch']
  %s0 = inlined_call_operand.hbm [shape: f32[64,128], index: 0, kind: input, shape index: {}]
  %s1 = inlined_call_operand.hbm [shape: f32[128,128], index: 1, kind: input, shape index: {}]
  %s2 = inlined_call_operand.vmem [shape: f32[1,128], index: 2, kind: input, shape index: {}]
  %s3 = inlined_call_operand.hbm [shape: f32[64,128], index: 3, kind: output, shape index: {}]
  %s4 = sld [smem:[#allocation0]]
  $region30: #{tpu_custom_call.1} parent=0
    _
  %s6 = ssub.s32 1, %s4
  %s7 = scalar_select 0, %s6, %s4
  $region1: #{tpu_custom_call.1} parent=0
    #allocation2 [shape = 'u8[32768]{0}', space=vmem, size = 0x8000, scoped, tag = 'input window, operand 0, single buffered']
    #allocation3 [shape = 's32[1]{0}', space=sflag, size = 0x4, scoped, tag = 'scoped memory for tpu_custom_call.1']
    #allocation4 [shape = 's32[1]{0}', space=sflag, size = 0x4, scoped, tag = 'scoped memory for tpu_custom_call.1']
    #allocation5 [shape = 'u8[65536]{0}', space=vmem, size = 0x10000, scoped, tag = 'input window, operand 1, single buffered']
    #allocation6 [shape = 's32[1]{0}', space=sflag, size = 0x4, scoped, tag = 'scoped memory for tpu_custom_call.1']
    #allocation7 [shape = 'u8[32768]{0}', space=vmem, size = 0x8000, scoped, tag = 'output window, operand 0, single buffered']
    %8 = vsyncpa [#allocation3], 0
    %9 = vsyncpa [#allocation6], 0
    %10 = vsyncpa [#allocation4], 0
    // Predicated region
    $region2: #{tpu_custom_call.1} parent=1 // pred_check
      _
    $region3: #{tpu_custom_call.1} parent=1 // pred_check_branch
      %12 = sbr.rel (0) target = $region5
    $region4: #{tpu_custom_call.1} parent=1 // pred_region
      %s14 = ssub.s32 1024, 1024
      %15 = vsyncadd [#allocation3], %s14
      %s16 = sshll.u32 [#allocation2], 4
      %s17 = int_to_ptr.vmem [resolvable:$true] %s16
      %22 = dma.hbm_to_vmem [thread:$0]  %s0, 1024, %s17, [#allocation3], 128, 128, 8
    $region5: #{tpu_custom_call.1} parent=1 // pred_fallthru
      _
    // Predicated region
    $region6: #{tpu_custom_call.1} parent=1 // pred_check
      _
    $region7: #{tpu_custom_call.1} parent=1 // pred_check_branch
      %24 = sbr.rel (0) target = $region9
    $region8: #{tpu_custom_call.1} parent=1 // pred_region
      %s26 = ssub.s32 2048, 2048
      %27 = vsyncadd [#allocation6], %s26
      %s28 = sshll.u32 [#allocation5], 4
      %s29 = int_to_ptr.vmem [resolvable:$true] %s28
      %34 = dma.hbm_to_vmem [thread:$0]  %s1, 2048, %s29, [#allocation6], 128, 128, 8
    $region9: #{tpu_custom_call.1} parent=1 // pred_fallthru
      _
    // Predicated region
    $region10: #{tpu_custom_call.1} parent=1 // pred_check
      _
    $region11: #{tpu_custom_call.1} parent=1 // pred_check_branch
      %36 = sbr.rel (0) target = $region13
    $region12: #{tpu_custom_call.1} parent=1 // pred_region
      _
    $region13: #{tpu_custom_call.1} parent=1 // pred_fallthru
      _
    // Predicated region
    $region14: #{tpu_custom_call.1} parent=1 // pred_check
      _
    $region15: #{tpu_custom_call.1} parent=1 // pred_check_branch
      %38 = sbr.rel (0) target = $region17
    $region16: #{tpu_custom_call.1} parent=1 // pred_region
      %39 = dma.done [#allocation3], 1024
    $region17: #{tpu_custom_call.1} parent=1 // pred_fallthru
      _
    // Predicated region
    $region18: #{tpu_custom_call.1} parent=1 // pred_check
      _
    $region19: #{tpu_custom_call.1} parent=1 // pred_check_branch
      %41 = sbr.rel (0) target = $region21
    $region20: #{tpu_custom_call.1} parent=1 // pred_region
      %42 = dma.done [#allocation6], 2048
    $region21: #{tpu_custom_call.1} parent=1 // pred_fallthru
      _
    %v43 = vld [vmem:[#allocation2] sm:$0xff]
    %v44 = vld [vmem:[#allocation2 + $0x8] sm:$0xff]
    %v45 = vld [vmem:[#allocation2 + $0x10] sm:$0xff]
    %v46 = vld [vmem:[#allocation2 + $0x18] sm:$0xff]
    %v47 = vld [vmem:[#allocation2 + $0x20] sm:$0xff]
    %v48 = vld [vmem:[#allocation2 + $0x28] sm:$0xff]
    %v49 = vld [vmem:[#allocation2 + $0x30] sm:$0xff]
    %v50 = vld [vmem:[#allocation2 + $0x38] sm:$0xff]
    %v51 = vld [vmem:[#allocation5] sm:$0xff]
    %v52 = vld [vmem:[#allocation5 + $0x8] sm:$0xff]
    %v53 = vld [vmem:[#allocation5 + $0x10] sm:$0xff]
    %v54 = vld [vmem:[#allocation5 + $0x18] sm:$0xff]
    %v55 = vld [vmem:[#allocation5 + $0x20] sm:$0xff]
    %v56 = vld [vmem:[#allocation5 + $0x28] sm:$0xff]
    %v57 = vld [vmem:[#allocation5 + $0x30] sm:$0xff]
    %v58 = vld [vmem:[#allocation5 + $0x38] sm:$0xff]
    %v59 = vld [vmem:[#allocation5 + $0x40] sm:$0xff]
    %v60 = vld [vmem:[#allocation5 + $0x48] sm:$0xff]
    %v61 = vld [vmem:[#allocation5 + $0x50] sm:$0xff]
    %v62 = vld [vmem:[#allocation5 + $0x58] sm:$0xff]
    %v63 = vld [vmem:[#allocation5 + $0x60] sm:$0xff]
    %v64 = vld [vmem:[#allocation5 + $0x68] sm:$0xff]
    %v65 = vld [vmem:[#allocation5 + $0x70] sm:$0xff]
    %v66 = vld [vmem:[#allocation5 + $0x78] sm:$0xff]
    %v67 = vld [vmem:[%s2] sm:$0x1]
    %v69 = vlaneseq
    %v70 = vshrl.u32 %v69, 7
    %v71 = vsub.s32 0, %v70
    %v72 = vrot.slane %v67, %v71
    %74 = vmatprep.subr.mxu0 0.0
    %75 = vmatpush1.msra.mxu0 %v51
    %76 = vmatprep.subr.mxu0 0.0
    %77 = vmatpush1.msra.mxu0 %v52
    %78 = vmatprep.subr.mxu0 0.0
    %79 = vmatpush1.msra.mxu0 %v53
    %80 = vmatprep.subr.mxu0 0.0
    %81 = vmatpush1.msra.mxu0 %v54
    %82 = vmatprep.subr.mxu0 0.0
    %83 = vmatpush1.msra.mxu0 %v55
    %84 = vmatprep.subr.mxu0 0.0
    %85 = vmatpush1.msra.mxu0 %v56
    %86 = vmatprep.subr.mxu0 0.0
    %87 = vmatpush1.msra.mxu0 %v57
    %88 = vmatprep.subr.mxu0 0.0
    %89 = vmatpush1.msra.mxu0 %v58
    %90 = vmatprep.subr.mxu0 0.0
    %91 = vmatpush1.msra.mxu0 %v59
    %92 = vmatprep.subr.mxu0 0.0
    %93 = vmatpush1.msra.mxu0 %v60
    %94 = vmatprep.subr.mxu0 0.0
    %95 = vmatpush1.msra.mxu0 %v61
    %96 = vmatprep.subr.mxu0 0.0
    %97 = vmatpush1.msra.mxu0 %v62
    %98 = vmatprep.subr.mxu0 0.0
    %99 = vmatpush1.msra.mxu0 %v63
    %100 = vmatprep.subr.mxu0 0.0
    %101 = vmatpush1.msra.mxu0 %v64
    %102 = vmatprep.subr.mxu0 0.0
    %103 = vmatpush1.msra.mxu0 %v65
    %104 = vmatprep.subr.mxu0 0.0
    %105 = vmatpush1.msra.mxu0 %v66
    %106 = vmatprep.subr.mxu0 0.0
    %107 = vmatpush1.msra.mxu0 0.0
    %108 = vmatprep.subr.mxu0 0.0
    %109 = vmatpush1.msra.mxu0 0.0
    %110 = vmatprep.subr.mxu0 0.0
    %111 = vmatpush1.msra.mxu0 0.0
    %112 = vmatprep.subr.mxu0 0.0
    %113 = vmatpush1.msra.mxu0 0.0
    %114 = vmatprep.subr.mxu0 0.0
    %115 = vmatpush1.msra.mxu0 0.0
    %116 = vmatprep.subr.mxu0 0.0
    %117 = vmatpush1.msra.mxu0 0.0
    %118 = vmatprep.subr.mxu0 0.0
    %119 = vmatpush1.msra.mxu0 0.0
    %120 = vmatprep.subr.mxu0 0.0
    %121 = vmatpush1.msra.mxu0 0.0
    %122 = vmatprep.subr.mxu0 0.0
    %123 = vmatpush1.msra.mxu0 0.0
    %124 = vmatprep.subr.mxu0 0.0
    %125 = vmatpush1.msra.mxu0 0.0
    %126 = vmatprep.subr.mxu0 0.0
    %127 = vmatpush1.msra.mxu0 0.0
    %128 = vmatprep.subr.mxu0 0.0
    %129 = vmatpush1.msra.mxu0 0.0
    %130 = vmatprep.subr.mxu0 0.0
    %131 = vmatpush1.msra.mxu0 0.0
    %132 = vmatprep.subr.mxu0 0.0
    %133 = vmatpush1.msra.mxu0 0.0
    %134 = vmatprep.subr.mxu0 0.0
    %135 = vmatpush1.msra.mxu0 0.0
    %136 = vmatprep.subr.mxu0 0.0
    %137 = vmatpush1.msra.mxu0 0.0
    %138 = vmatprep.mubr.f32.mxu0 0.0
    %139 = vmatmul.mubr.f32.gmra.mrb[0].mxu0 %v43
    %v140 = vpop.f32.mrb[0].mxu0
    %v141 = vadd.f32 %v72, %v140
    %v142 = vpop.f32.mrb[0].mxu0
    %143 = vmatprep.mubr.f32.mxu0 0.0
    %144 = vmatmul.mubr.f32.gmra.mrb[0].mxu0 %v44
    %v145 = vpop.f32.mrb[0].mxu0
    %v146 = vadd.f32 %v72, %v145
    %v147 = vpop.f32.mrb[0].mxu0
    %148 = vmatprep.mubr.f32.mxu0 0.0
    %149 = vmatmul.mubr.f32.gmra.mrb[0].mxu0 %v45
    %v150 = vpop.f32.mrb[0].mxu0
    %v151 = vadd.f32 %v72, %v150
    %v152 = vpop.f32.mrb[0].mxu0
    %153 = vmatprep.mubr.f32.mxu0 0.0
    %154 = vmatmul.mubr.f32.gmra.mrb[0].mxu0 %v46
    %v155 = vpop.f32.mrb[0].mxu0
    %v156 = vadd.f32 %v72, %v155
    %v157 = vpop.f32.mrb[0].mxu0
    %158 = vmatprep.mubr.f32.mxu0 0.0
    %159 = vmatmul.mubr.f32.gmra.mrb[0].mxu0 %v47
    %v160 = vpop.f32.mrb[0].mxu0
    %v161 = vadd.f32 %v72, %v160
    %v162 = vpop.f32.mrb[0].mxu0
    %163 = vmatprep.mubr.f32.mxu0 0.0
    %164 = vmatmul.mubr.f32.gmra.mrb[0].mxu0 %v48
    %v165 = vpop.f32.mrb[0].mxu0
    %v166 = vadd.f32 %v72, %v165
    %v167 = vpop.f32.mrb[0].mxu0
    %168 = vmatprep.mubr.f32.mxu0 0.0
    %169 = vmatmul.mubr.f32.gmra.mrb[0].mxu0 %v49
    %v170 = vpop.f32.mrb[0].mxu0
    %v171 = vadd.f32 %v72, %v170
    %v172 = vpop.f32.mrb[0].mxu0
    %173 = vmatprep.mubr.f32.mxu0 0.0
    %174 = vmatmul.mubr.f32.gmra.mrb[0].mxu0 %v50
    %v175 = vpop.f32.mrb[0].mxu0
    %v176 = vadd.f32 %v72, %v175
    %v177 = vpop.f32.mrb[0].mxu0
    %178 = vdwg.mxu0
    %179 = vst [vmem:[#allocation7] sm:$0xff] %v141
    %180 = vst [vmem:[#allocation7 + $0x8] sm:$0xff] %v146
    %181 = vst [vmem:[#allocation7 + $0x10] sm:$0xff] %v151
    %182 = vst [vmem:[#allocation7 + $0x18] sm:$0xff] %v156
    %183 = vst [vmem:[#allocation7 + $0x20] sm:$0xff] %v161
    %184 = vst [vmem:[#allocation7 + $0x28] sm:$0xff] %v166
    %185 = vst [vmem:[#allocation7 + $0x30] sm:$0xff] %v171
    %186 = vst [vmem:[#allocation7 + $0x38] sm:$0xff] %v176
    // Predicated region
    $region22: #{tpu_custom_call.1} parent=1 // pred_check
      _
    $region23: #{tpu_custom_call.1} parent=1 // pred_check_branch
      %188 = sbr.rel (0) target = $region25
    $region24: #{tpu_custom_call.1} parent=1 // pred_region
      %s190 = ssub.s32 1024, 1024
      %191 = vsyncadd [#allocation4], %s190
      %s192 = sshll.u32 [#allocation7], 4
      %s193 = int_to_ptr.vmem [resolvable:$true] %s192
      %198 = dma.vmem_to_hbm [thread:$0]  %s193, 1024, %s3, [#allocation4], 128, 128, 8
    $region25: #{tpu_custom_call.1} parent=1 // pred_fallthru
      _
    // Predicated region
    $region26: #{tpu_custom_call.1} parent=1 // pred_check
      _
    $region27: #{tpu_custom_call.1} parent=1 // pred_check_branch
      %200 = sbr.rel (0) target = $region29
    $region28: #{tpu_custom_call.1} parent=1 // pred_region
      %201 = dma.done [#allocation4], 1024
    $region29: #{tpu_custom_call.1} parent=1 // pred_fallthru
      _
    %202 = vsyncpa [#allocation3], 1
    %203 = vsyncpa [#allocation6], 1
    %204 = vsyncpa [#allocation4], 1

</llo_original>
